<compile_context>
chip_gen: v7x
topology: tpu7x:2x2x1
jax: 0.10.0
libtpu: 0.0.40
codegen_flags: <defaults>
</compile_context>

<pallas_src>
import functools

import jax
import jax.numpy as jnp
from jax.experimental import pallas as pl
from jax.experimental.pallas import tpu as pltpu


LEAKY_SLOPE = 0.01   # F.leaky_relu default negative_slope
BAND = 128           # column band width per layer inside the packed weight blob


def _round_up(x, m):
    return ((x + m - 1) // m) * m


def _num_tensorcores():
    """Best-effort TensorCore count (2 on v7x-style chips, else 1)."""
    try:
        return max(1, int(getattr(jax.devices()[0], "num_cores", 1)))
    except Exception:
        return 1


# ----------------------------------------------------------------------------- kernel
def _actor_kernel(x_ref, w_ref, b_ref, out_ref, *, n_hidden, action_bound):
    """Whole network for one batch tile.

    x_ref:   (tile_b, 128) f32   state, zero-padded lanes beyond state_size.
    w_ref:   (128, n_hidden*128 + 256) bf16  BN-folded weights in zero-padded bands.
    b_ref:   (1,   n_hidden*128 + 256) f32   combined biases.
    out_ref: (tile_b, 256) f32   lanes [0,128) = mu band, [128,256) = std band.
    """
    h = x_ref[...].astype(jnp.bfloat16)
    for l in range(n_hidden):
        w = w_ref[:, l * BAND:(l + 1) * BAND]                     # static 128-aligned slice
        c = b_ref[:, l * BAND:(l + 1) * BAND]
        z = jnp.dot(h, w, preferred_element_type=jnp.float32) + c
        # Linear -> folded BN -> LeakyReLU (Dropout = identity in eval mode).
        # Zero-padded lanes stay exactly zero through this, preserving correctness.
        h = jnp.maximum(z, LEAKY_SLOPE * z).astype(jnp.bfloat16)

    off = n_hidden * BAND
    z = jnp.dot(h, w_ref[:, off:off + 2 * BAND],
                preferred_element_type=jnp.float32) + b_ref[:, off:off + 2 * BAND]
    out_ref[:, 0:BAND] = jnp.tanh(z[:, 0:BAND]) * action_bound          # mu band
    out_ref[:, BAND:2 * BAND] = jnp.logaddexp(z[:, BAND:2 * BAND], 0.0)  # std band (softplus)


# ----------------------------------------------------------------------------- params
def make_actor_params(key, state_size, action_size):
    """Raw parameters mirroring the PyTorch module (eval-mode BN stats included)."""
    dims = [(state_size, 128), (128, 128), (128, 64), (64, 64), (64, 32)]
    params = {}
    keys = jax.random.split(key, len(dims) + 2)

    for i, (fi, fo) in enumerate(dims, start=1):
        kw, kb, ks = jax.random.split(keys[i - 1], 3)
        params[f"w{i}"] = jnp.sqrt(2.0 / fi) * jax.random.normal(kw, (fi, fo), jnp.float32)
        bound = 1.0 / float(fi) ** 0.5
        params[f"b{i}"] = jax.random.uniform(kb, (fo,), jnp.float32, -bound, bound)
        k1, k2, k3, k4 = jax.random.split(ks, 4)
        params[f"gamma{i}"] = jax.random.uniform(k1, (fo,), jnp.float32, 0.8, 1.2)
        params[f"beta{i}"] = 0.1 * jax.random.normal(k2, (fo,), jnp.float32)
        params[f"mean{i}"] = 0.1 * jax.random.normal(k3, (fo,), jnp.float32)
        params[f"var{i}"] = jax.random.uniform(k4, (fo,), jnp.float32, 0.5, 1.5)

    def xavier(k, fi, fo):
        lim = jnp.sqrt(6.0 / (fi + fo))
        return jax.random.uniform(k, (fi, fo), jnp.float32, -lim, lim)

    bnd = 1.0 / 32.0 ** 0.5
    kmw, kmb = jax.random.split(keys[5])
    ksw, ksb = jax.random.split(keys[6])
    params["wmu"] = xavier(kmw, 32, action_size)
    params["bmu"] = jax.random.uniform(kmb, (action_size,), jnp.float32, -bnd, bnd)
    params["wstd"] = xavier(ksw, 32, action_size)
    params["bstd"] = jax.random.uniform(ksb, (action_size,), jnp.float32, -bnd, bnd)
    return params


def pack_actor_params(params, state_size, action_size, eps=1e-5):
    """Fold BN into W/bias and pack everything into zero-padded 128-wide bands."""
    assert state_size <= BAND, "kernel assumes state_size <= 128"
    assert action_size <= BAND
    hidden = [(state_size, 128), (128, 128), (128, 64), (64, 64), (64, 32)]
    n_hidden = len(hidden)

    ws, cs = [], []
    for i, (fi, fo) in enumerate(hidden, start=1):
        s = params[f"gamma{i}"] / jnp.sqrt(params[f"var{i}"] + eps)
        ws.append(params[f"w{i}"] * s[None, :])                          # column scale
        cs.append((params[f"b{i}"] - params[f"mean{i}"]) * s + params[f"beta{i}"])

    total_cols = n_hidden * BAND + 2 * BAND                              # 5 hidden + fused head
    w_blob = jnp.zeros((BAND, total_cols), jnp.float32)
    b_blob = jnp.zeros((1, total_cols), jnp.float32)
    for l, ((fi, fo), w, c) in enumerate(zip(hidden, ws, cs)):
        off = l * BAND
        w_blob = w_blob.at[:fi, off:off + fo].set(w)
        b_blob = b_blob.at[0, off:off + fo].set(c)

    off = n_hidden * BAND                                                # fused mu|std head
    w_blob = w_blob.at[:32, off:off + action_size].set(params["wmu"])
    b_blob = b_blob.at[0, off:off + action_size].set(params["bmu"])
    w_blob = w_blob.at[:32, off + BAND:off + BAND + action_size].set(params["wstd"])
    b_blob = b_blob.at[0, off + BAND:off + BAND + action_size].set(params["bstd"])

    return {
        "w_blob": w_blob.astype(jnp.bfloat16),   # MXU-native operands
        "w_blob_f32": w_blob,                    # kept for correctness checks only
        "b_blob": b_blob,                        # combined bias stays f32
        "n_hidden": n_hidden,
        "action_size": int(action_size),
        "state_size": int(state_size),
    }


# ----------------------------------------------------------------------------- wrapper
def actor_forward(state, packed, action_bound, tile_b=None):
    """state: (B, state_size) f32 -> (mu, std), each (B, action_size) f32."""
    batch, s_dim = state.shape
    assert s_dim == packed["state_size"] and s_dim <= BAND
    n_hidden = packed["n_hidden"]
    action_size = packed["action_size"]
    w_blob, b_blob = packed["w_blob"], packed["b_blob"]

    # Few, large batch tiles: 1 grid step on single-TC chips (v5e/v6e); on multi-TC
    # chips (v7x) default to #cores parallel steps so both TensorCores are used.
    if tile_b is None:
        steps = _num_tensorcores() if batch >= 16 else 1
        tile_b = _round_up(pl.cdiv(batch, steps), 8)
    tile_b = max(8, _round_up(int(tile_b), 8))
    padded_b = _round_up(batch, tile_b)
    grid = (padded_b // tile_b,)

    # One pad op covers both ragged-batch rows and lane padding to 128 (it is a
    # no-op when batch % tile_b == 0 and state_size == 128).
    pad_r, pad_c = padded_b - batch, BAND - s_dim
    if pad_r or pad_c:
        state = jnp.pad(state, ((0, pad_r), (0, pad_c)))

    kernel = functools.partial(_actor_kernel, n_hidden=n_hidden,
                               action_bound=float(action_bound))

    cost = pl.CostEstimate(
        flops=2 * padded_b * BAND * (n_hidden * BAND + 2 * BAND),
        transcendentals=padded_b * 2 * BAND,
        bytes_accessed=(padded_b * BAND * 4 + padded_b * 2 * BAND * 4
                        + w_blob.size * 2 + b_blob.size * 4),
    )

    out = pl.pallas_call(
        kernel,
        out_shape=jax.ShapeDtypeStruct((padded_b, 2 * BAND), jnp.float32),
        grid=grid,
        in_specs=[
            pl.BlockSpec((tile_b, BAND), lambda i: (i, 0)),       # batch-tiled, lane-padded state
            pl.BlockSpec(w_blob.shape, lambda i: (0, 0)),         # resident bf16 weight blob
            pl.BlockSpec(b_blob.shape, lambda i: (0, 0)),         # resident f32 bias blob
        ],
        out_specs=pl.BlockSpec((tile_b, 2 * BAND), lambda i: (i, 0)),  # lane-dense output slab
        compiler_params=pltpu.CompilerParams(
            dimension_semantics=("parallel",)),
        cost_estimate=cost,
    )(state, w_blob, b_blob)

    mu = out[:batch, :action_size]
    std = out[:batch, BAND:BAND + action_size]
    return mu, std


# ----------------------------------------------------------------------------- references
def actor_forward_ref(state, params, action_bound, eps=1e-5):
    """Pure-JAX f32 reference of the original PyTorch forward (eval mode)."""
    h = state
    for i in range(1, 6):
        y = h @ params[f"w{i}"] + params[f"b{i}"]
        y = (y - params[f"mean{i}"]) / jnp.sqrt(params[f"var{i}"] + eps) \
            * params[f"gamma{i}"] + params[f"beta{i}"]
        h = jnp.where(y > 0, y, LEAKY_SLOPE * y)        # dropout eval = identity
    mu = jnp.tanh(h @ params["wmu"] + params["bmu"]) * action_bound
    std = jax.nn.softplus(h @ params["wstd"] + params["bstd"])
    return mu, std


def actor_forward_ref_packed(state, packed, action_bound, use_bf16=True):
    """Reference that mimics the kernel exactly (folded/padded bands, bf16 optional)."""
    w_blob = packed["w_blob"] if use_bf16 else packed["w_blob_f32"]
    b_blob = packed["b_blob"]
    n_hidden = packed["n_hidden"]
    a = packed["action_size"]
    s_dim = state.shape[1]

    h = jnp.pad(state.astype(jnp.float32), ((0, 0), (0, BAND - s_dim)))
    if use_bf16:
        h = h.astype(jnp.bfloat16)
    for l in range(n_hidden):
        w = w_blob[:, l * BAND:(l + 1) * BAND]
        c = b_blob[:, l * BAND:(l + 1) * BAND]
        z = jnp.dot(h, w, preferred_element_type=jnp.float32) + c
        h = jnp.maximum(z, LEAKY_SLOPE * z)
        if use_bf16:
            h = h.astype(jnp.bfloat16)
    off = n_hidden * BAND
    z = jnp.dot(h, w_blob[:, off:off + 2 * BAND],
                preferred_element_type=jnp.float32) + b_blob[:, off:off + 2 * BAND]
    mu = jnp.tanh(z[:, :BAND]) * action_bound
    std = jax.nn.softplus(z[:, BAND:])
    return mu[:, :a], std[:, :a]


# ----------------------------------------------------------------------------- self-test
if __name__ == "__main__":
    key = jax.random.PRNGKey(0)
    state_size = 24       # e.g. 24 LIDAR rays
    action_size = 2       # (linear vel, angular vel)
    action_bound = 1.5
    batch = 64

    pkey, xkey = jax.random.split(key)
    params = make_actor_params(pkey, state_size, action_size)
    packed = pack_actor_params(params, state_size, action_size)
    state = jax.random.normal(xkey, (batch, state_size), jnp.float32)

    # Default path: largest tile (grid=1 on single-TC chips, #cores tiles on v7x).
    mu, std = actor_forward(state, packed, action_bound)
    jax.block_until_ready((mu, std))

    # Also exercise a multi-step parallel batch grid and check it matches.
    mu2, std2 = actor_forward(state, packed, action_bound, tile_b=32)
    jax.block_until_ready((mu2, std2))

    mu_p, std_p = actor_forward_ref_packed(state, packed, action_bound, use_bf16=True)
    mu_f, std_f = actor_forward_ref_packed(state, packed, action_bound, use_bf16=False)
    mu_r, std_r = actor_forward_ref(state, params, action_bound)

    assert mu.shape == (batch, action_size) and std.shape == (batch, action_size)
    # Kernel vs bf16-mimicking reference (tight).
    assert jnp.allclose(mu, mu_p, atol=1e-3, rtol=1e-3)
    assert jnp.allclose(std, std_p, atol=1e-3, rtol=1e-3)
    # Grid-of-2 path agrees with grid-of-1 path.
    assert jnp.allclose(mu, mu2, atol=1e-5, rtol=1e-5)
    assert jnp.allclose(std, std2, atol=1e-5, rtol=1e-5)
    # Folded-f32 vs raw f32 module semantics (validates BN/bias/head folding & padding).
    assert jnp.allclose(mu_f, mu_r, atol=1e-4, rtol=1e-4)
    assert jnp.allclose(std_f, std_r, atol=1e-4, rtol=1e-4)
    # Kernel vs ground-truth f32 forward (loose: bf16 matmul operand rounding).
    assert jnp.allclose(mu, mu_r, atol=1e-1, rtol=1e-1)
    assert jnp.allclose(std, std_r, atol=1e-1, rtol=1e-1)
    assert bool(jnp.all(std > 0))

    print("KERNEL_OK")
</pallas_src>

<mosaic_0001>
module attributes {stable_mosaic.version = 11 : i64} {
  func.func @_actor_kernel(%arg0: i32, %arg1: memref<64x128xf32, #tpu.memory_space<vmem>>, %arg2: memref<128x896xbf16, #tpu.memory_space<vmem>>, %arg3: memref<1x896xf32, #tpu.memory_space<vmem>>, %arg4: memref<64x256xf32, #tpu.memory_space<vmem>>) attributes {dimension_semantics = [#tpu.dimension_semantics<parallel>], iteration_bounds = array<i64: 1>, scalar_prefetch = 0 : i64, scratch_operands = 0 : i64, tpu.core_type = #tpu.core_type<tc>, window_params = [{transform_indices = @transform_0, window_bounds = array<i64: 64, 128>}, {pipeline_mode = #tpu.pipeline_mode<synchronous>, transform_indices = @transform_1, window_bounds = array<i64: 128, 896>}, {pipeline_mode = #tpu.pipeline_mode<synchronous>, transform_indices = @transform_2, window_bounds = array<i64: 1, 896>}, {transform_indices = @transform_3, window_bounds = array<i64: 64, 256>}]} {
    %c0 = arith.constant 0 : index
    %c0_0 = arith.constant 0 : index
    %0 = vector.load %arg1[%c0, %c0_0] : memref<64x128xf32, #tpu.memory_space<vmem>>, vector<64x128xf32>
    %1 = arith.truncf %0 : vector<64x128xf32> to vector<64x128xbf16>
    %c0_1 = arith.constant 0 : index
    %c0_2 = arith.constant 0 : index
    %2 = vector.load %arg2[%c0_1, %c0_2] : memref<128x896xbf16, #tpu.memory_space<vmem>>, vector<128x128xbf16>
    %c0_3 = arith.constant 0 : index
    %c0_4 = arith.constant 0 : index
    %3 = vector.load %arg3[%c0_3, %c0_4] : memref<1x896xf32, #tpu.memory_space<vmem>>, vector<1x128xf32>
    %cst = arith.constant dense<0.000000e+00> : vector<64x128xf32>
    %4 = tpu.matmul %1, %2, %cst {dimension_numbers = #tpu.dot_dimension_numbers<[1], [0], [0], [1], [0, 0, 1, 1], [], []>} : vector<64x128xbf16>, vector<128x128xbf16>, vector<64x128xf32> -> vector<64x128xf32>
    %5 = vector.broadcast %3 : vector<1x128xf32> to vector<64x128xf32>
    %6 = arith.addf %4, %5 : vector<64x128xf32>
    %cst_5 = arith.constant 0.00999999977 : f32
    %7 = vector.broadcast %cst_5 : f32 to vector<64x128xf32>
    %8 = arith.mulf %7, %6 : vector<64x128xf32>
    %9 = arith.maximumf %6, %8 : vector<64x128xf32>
    %10 = arith.truncf %9 : vector<64x128xf32> to vector<64x128xbf16>
    %c0_6 = arith.constant 0 : index
    %c128 = arith.constant 128 : index
    %11 = vector.load %arg2[%c0_6, %c128] : memref<128x896xbf16, #tpu.memory_space<vmem>>, vector<128x128xbf16>
    %c0_7 = arith.constant 0 : index
    %c128_8 = arith.constant 128 : index
    %12 = vector.load %arg3[%c0_7, %c128_8] : memref<1x896xf32, #tpu.memory_space<vmem>>, vector<1x128xf32>
    %cst_9 = arith.constant dense<0.000000e+00> : vector<64x128xf32>
    %13 = tpu.matmul %10, %11, %cst_9 {dimension_numbers = #tpu.dot_dimension_numbers<[1], [0], [0], [1], [0, 0, 1, 1], [], []>} : vector<64x128xbf16>, vector<128x128xbf16>, vector<64x128xf32> -> vector<64x128xf32>
    %14 = vector.broadcast %12 : vector<1x128xf32> to vector<64x128xf32>
    %15 = arith.addf %13, %14 : vector<64x128xf32>
    %cst_10 = arith.constant 0.00999999977 : f32
    %16 = vector.broadcast %cst_10 : f32 to vector<64x128xf32>
    %17 = arith.mulf %16, %15 : vector<64x128xf32>
    %18 = arith.maximumf %15, %17 : vector<64x128xf32>
    %19 = arith.truncf %18 : vector<64x128xf32> to vector<64x128xbf16>
    %c0_11 = arith.constant 0 : index
    %c256 = arith.constant 256 : index
    %20 = vector.load %arg2[%c0_11, %c256] : memref<128x896xbf16, #tpu.memory_space<vmem>>, vector<128x128xbf16>
    %c0_12 = arith.constant 0 : index
    %c256_13 = arith.constant 256 : index
    %21 = vector.load %arg3[%c0_12, %c256_13] : memref<1x896xf32, #tpu.memory_space<vmem>>, vector<1x128xf32>
    %cst_14 = arith.constant dense<0.000000e+00> : vector<64x128xf32>
    %22 = tpu.matmul %19, %20, %cst_14 {dimension_numbers = #tpu.dot_dimension_numbers<[1], [0], [0], [1], [0, 0, 1, 1], [], []>} : vector<64x128xbf16>, vector<128x128xbf16>, vector<64x128xf32> -> vector<64x128xf32>
    %23 = vector.broadcast %21 : vector<1x128xf32> to vector<64x128xf32>
    %24 = arith.addf %22, %23 : vector<64x128xf32>
    %cst_15 = arith.constant 0.00999999977 : f32
    %25 = vector.broadcast %cst_15 : f32 to vector<64x128xf32>
    %26 = arith.mulf %25, %24 : vector<64x128xf32>
    %27 = arith.maximumf %24, %26 : vector<64x128xf32>
    %28 = arith.truncf %27 : vector<64x128xf32> to vector<64x128xbf16>
    %c0_16 = arith.constant 0 : index
    %c384 = arith.constant 384 : index
    %29 = vector.load %arg2[%c0_16, %c384] : memref<128x896xbf16, #tpu.memory_space<vmem>>, vector<128x128xbf16>
    %c0_17 = arith.constant 0 : index
    %c384_18 = arith.constant 384 : index
    %30 = vector.load %arg3[%c0_17, %c384_18] : memref<1x896xf32, #tpu.memory_space<vmem>>, vector<1x128xf32>
    %cst_19 = arith.constant dense<0.000000e+00> : vector<64x128xf32>
    %31 = tpu.matmul %28, %29, %cst_19 {dimension_numbers = #tpu.dot_dimension_numbers<[1], [0], [0], [1], [0, 0, 1, 1], [], []>} : vector<64x128xbf16>, vector<128x128xbf16>, vector<64x128xf32> -> vector<64x128xf32>
    %32 = vector.broadcast %30 : vector<1x128xf32> to vector<64x128xf32>
    %33 = arith.addf %31, %32 : vector<64x128xf32>
    %cst_20 = arith.constant 0.00999999977 : f32
    %34 = vector.broadcast %cst_20 : f32 to vector<64x128xf32>
    %35 = arith.mulf %34, %33 : vector<64x128xf32>
    %36 = arith.maximumf %33, %35 : vector<64x128xf32>
    %37 = arith.truncf %36 : vector<64x128xf32> to vector<64x128xbf16>
    %c0_21 = arith.constant 0 : index
    %c512 = arith.constant 512 : index
    %38 = vector.load %arg2[%c0_21, %c512] : memref<128x896xbf16, #tpu.memory_space<vmem>>, vector<128x128xbf16>
    %c0_22 = arith.constant 0 : index
    %c512_23 = arith.constant 512 : index
    %39 = vector.load %arg3[%c0_22, %c512_23] : memref<1x896xf32, #tpu.memory_space<vmem>>, vector<1x128xf32>
    %cst_24 = arith.constant dense<0.000000e+00> : vector<64x128xf32>
    %40 = tpu.matmul %37, %38, %cst_24 {dimension_numbers = #tpu.dot_dimension_numbers<[1], [0], [0], [1], [0, 0, 1, 1], [], []>} : vector<64x128xbf16>, vector<128x128xbf16>, vector<64x128xf32> -> vector<64x128xf32>
    %41 = vector.broadcast %39 : vector<1x128xf32> to vector<64x128xf32>
    %42 = arith.addf %40, %41 : vector<64x128xf32>
    %cst_25 = arith.constant 0.00999999977 : f32
    %43 = vector.broadcast %cst_25 : f32 to vector<64x128xf32>
    %44 = arith.mulf %43, %42 : vector<64x128xf32>
    %45 = arith.maximumf %42, %44 : vector<64x128xf32>
    %46 = arith.truncf %45 : vector<64x128xf32> to vector<64x128xbf16>
    %c0_26 = arith.constant 0 : index
    %c640 = arith.constant 640 : index
    %47 = vector.load %arg2[%c0_26, %c640] : memref<128x896xbf16, #tpu.memory_space<vmem>>, vector<128x256xbf16>
    %cst_27 = arith.constant dense<0.000000e+00> : vector<64x256xf32>
    %48 = tpu.matmul %46, %47, %cst_27 {dimension_numbers = #tpu.dot_dimension_numbers<[1], [0], [0], [1], [0, 0, 1, 1], [], []>} : vector<64x128xbf16>, vector<128x256xbf16>, vector<64x256xf32> -> vector<64x256xf32>
    %c0_28 = arith.constant 0 : index
    %c640_29 = arith.constant 640 : index
    %49 = vector.load %arg3[%c0_28, %c640_29] : memref<1x896xf32, #tpu.memory_space<vmem>>, vector<1x256xf32>
    %50 = vector.broadcast %49 : vector<1x256xf32> to vector<64x256xf32>
    %51 = arith.addf %48, %50 : vector<64x256xf32>
    %52 = vector.extract_strided_slice %51 {offsets = [0, 0], sizes = [64, 128], strides = [1, 1]} : vector<64x256xf32> to vector<64x128xf32>
    %53 = math.tanh %52 : vector<64x128xf32>
    %cst_30 = arith.constant 1.500000e+00 : f32
    %54 = vector.broadcast %cst_30 : f32 to vector<64x128xf32>
    %55 = arith.mulf %53, %54 : vector<64x128xf32>
    %c0_31 = arith.constant 0 : index
    %c0_32 = arith.constant 0 : index
    %56 = vector.load %arg4[%c0_31, %c0_32] : memref<64x256xf32, #tpu.memory_space<vmem>>, vector<64x128xf32>
    tpu.vector_store %arg4[%c0_31, %c0_32], %55 {strides = array<i32>} : memref<64x256xf32, #tpu.memory_space<vmem>>, vector<64x128xf32>,
    %57 = vector.extract_strided_slice %51 {offsets = [0, 128], sizes = [64, 128], strides = [1, 1]} : vector<64x256xf32> to vector<64x128xf32>
    %cst_33 = arith.constant 0.000000e+00 : f32
    %58 = vector.broadcast %cst_33 : f32 to vector<64x128xf32>
    %59 = arith.maximumf %57, %58 : vector<64x128xf32>
    %60 = vector.broadcast %cst_33 : f32 to vector<64x128xf32>
    %61 = arith.subf %57, %60 : vector<64x128xf32>
    %62 = arith.cmpf one, %61, %61 : vector<64x128xf32>
    %63 = vector.broadcast %cst_33 : f32 to vector<64x128xf32>
    %64 = arith.addf %57, %63 : vector<64x128xf32>
    %65 = math.absf %61 : vector<64x128xf32>
    %cst_34 = arith.constant 0.000000e+00 : f32
    %66 = vector.broadcast %cst_34 : f32 to vector<64x128xf32>
    %67 = arith.subf %66, %65 : vector<64x128xf32>
    %68 = math.exp %67 : vector<64x128xf32>
    %69 = math.log1p %68 : vector<64x128xf32>
    %70 = arith.addf %59, %69 : vector<64x128xf32>
    %71 = arith.select %62, %64, %70 : vector<64x128xi1>, vector<64x128xf32>
    %c0_35 = arith.constant 0 : index
    %c128_36 = arith.constant 128 : index
    %72 = vector.load %arg4[%c0_35, %c128_36] : memref<64x256xf32, #tpu.memory_space<vmem>>, vector<64x128xf32>
    tpu.vector_store %arg4[%c0_35, %c128_36], %71 {strides = array<i32>} : memref<64x256xf32, #tpu.memory_space<vmem>>, vector<64x128xf32>,
    return
  }
  func.func @transform_0(%arg0: i32) -> (i32, i32) {
    %c0_i32 = arith.constant 0 : i32
    %c0_i32_0 = arith.constant 0 : i32
    return %arg0, %c0_i32 : i32, i32
  }
  func.func @transform_1(%arg0: i32) -> (i32, i32) {
    %c0_i32 = arith.constant 0 : i32
    %c0_i32_0 = arith.constant 0 : i32
    %c0_i32_1 = arith.constant 0 : i32
    return %c0_i32, %c0_i32_0 : i32, i32
  }
  func.func @transform_2(%arg0: i32) -> (i32, i32) {
    %c0_i32 = arith.constant 0 : i32
    %c0_i32_0 = arith.constant 0 : i32
    %c0_i32_1 = arith.constant 0 : i32
    return %c0_i32, %c0_i32_0 : i32, i32
  }
  func.func @transform_3(%arg0: i32) -> (i32, i32) {
    %c0_i32 = arith.constant 0 : i32
    %c0_i32_0 = arith.constant 0 : i32
    return %arg0, %c0_i32 : i32, i32
  }
}

</mosaic_0001>

<llo_original>
// kernel: tpu_custom_call.1
$region0: #{tpu_custom_call.1}
  #allocation0 [shape = 'u32[]', space=smem, size = 0x4, offset = 0x4, fixed_abs, tag = 'smem constant byte address 0x4 - core index']
  #allocation1 [shape = 'u32[144,128]{1,0:T(1,128)}', space=vmem, size = 0x12000, scoped, tag = 'internal scratch']
  %s0 = inlined_call_operand.hbm [shape: f32[64,128], index: 0, kind: input, shape index: {}]
  %s1 = inlined_call_operand.hbm [shape: bf16[128,896], index: 1, kind: input, shape index: {}]
  %s2 = inlined_call_operand.vmem [shape: f32[1,896], index: 2, kind: input, shape index: {}]
  %s3 = inlined_call_operand.hbm [shape: f32[64,256], index: 3, kind: output, shape index: {}]
  %s4 = sld [smem:[#allocation0]]
  $region30: #{tpu_custom_call.1} parent=0
    _
  %s6 = ssub.s32 1, %s4
  %s7 = scalar_select 0, %s6, %s4
  $region1: #{tpu_custom_call.1} parent=0
    #allocation2 [shape = 'u8[32768]{0}', space=vmem, size = 0x8000, scoped, tag = 'input window, operand 0, single buffered']
    #allocation3 [shape = 's32[1]{0}', space=sflag, size = 0x4, scoped, tag = 'scoped memory for tpu_custom_call.1']
    #allocation4 [shape = 's32[1]{0}', space=sflag, size = 0x4, scoped, tag = 'scoped memory for tpu_custom_call.1']
    #allocation5 [shape = 'u8[229376]{0}', space=vmem, size = 0x38000, scoped, tag = 'input window, operand 1, single buffered']
    #allocation6 [shape = 's32[1]{0}', space=sflag, size = 0x4, scoped, tag = 'scoped memory for tpu_custom_call.1']
    #allocation7 [shape = 'u8[65536]{0}', space=vmem, size = 0x10000, scoped, tag = 'output window, operand 0, single buffered']
    %8 = vsyncpa [#allocation3], 0
    %9 = vsyncpa [#allocation6], 0
    %10 = vsyncpa [#allocation4], 0
    // Predicated region
    $region2: #{tpu_custom_call.1} parent=1 // pred_check
      _
    $region3: #{tpu_custom_call.1} parent=1 // pred_check_branch
      %12 = sbr.rel (0) target = $region5
    $region4: #{tpu_custom_call.1} parent=1 // pred_region
      %s14 = ssub.s32 1024, 1024
      %15 = vsyncadd [#allocation3], %s14
      %s16 = sshll.u32 [#allocation2], 4
      %s17 = int_to_ptr.vmem [resolvable:$true] %s16
      %22 = dma.hbm_to_vmem [thread:$0]  %s0, 1024, %s17, [#allocation3], 128, 128, 8
    $region5: #{tpu_custom_call.1} parent=1 // pred_fallthru
      _
    // Predicated region
    $region6: #{tpu_custom_call.1} parent=1 // pred_check
      _
    $region7: #{tpu_custom_call.1} parent=1 // pred_check_branch
      %24 = sbr.rel (0) target = $region9
    $region8: #{tpu_custom_call.1} parent=1 // pred_region
      %s26 = ssub.s32 7168, 7168
      %27 = vsyncadd [#allocation6], %s26
      %s28 = sshll.u32 [#allocation5], 4
      %s29 = int_to_ptr.vmem [resolvable:$true] %s28
      %34 = dma.hbm_to_vmem [thread:$0]  %s1, 7168, %s29, [#allocation6], 448, 448, 28
    $region9: #{tpu_custom_call.1} parent=1 // pred_fallthru
      _
    // Predicated region
    $region10: #{tpu_custom_call.1} parent=1 // pred_check
      _
    $region11: #{tpu_custom_call.1} parent=1 // pred_check_branch
      %36 = sbr.rel (0) target = $region13
    $region12: #{tpu_custom_call.1} parent=1 // pred_region
      _
    $region13: #{tpu_custom_call.1} parent=1 // pred_fallthru
      _
    // Predicated region
    $region14: #{tpu_custom_call.1} parent=1 // pred_check
      _
    $region15: #{tpu_custom_call.1} parent=1 // pred_check_branch
      %38 = sbr.rel (0) target = $region17
    $region16: #{tpu_custom_call.1} parent=1 // pred_region
      %39 = dma.done [#allocation3], 1024
    $region17: #{tpu_custom_call.1} parent=1 // pred_fallthru
      _
    // Predicated region
    $region18: #{tpu_custom_call.1} parent=1 // pred_check
      _
    $region19: #{tpu_custom_call.1} parent=1 // pred_check_branch
      %41 = sbr.rel (0) target = $region21
    $region20: #{tpu_custom_call.1} parent=1 // pred_region
      %42 = dma.done [#allocation6], 7168
    $region21: #{tpu_custom_call.1} parent=1 // pred_fallthru
      _
    %v44 = vld [vmem:[#allocation2] sm:$0xff]
    %v45 = vld [vmem:[#allocation2 + $0x8] sm:$0xff]
    %v46 = vld [vmem:[#allocation2 + $0x10] sm:$0xff]
    %v47 = vld [vmem:[#allocation2 + $0x18] sm:$0xff]
    %v48 = vld [vmem:[#allocation2 + $0x20] sm:$0xff]
    %v49 = vld [vmem:[#allocation2 + $0x28] sm:$0xff]
    %v50 = vld [vmem:[#allocation2 + $0x30] sm:$0xff]
    %v51 = vld [vmem:[#allocation2 + $0x38] sm:$0xff]
    %v52 = vpack.c.bf16 %v45, %v44
    %v53 = vpack.c.bf16 %v47, %v46
    %v54 = vpack.c.bf16 %v49, %v48
    %v55 = vpack.c.bf16 %v51, %v50
    %v56 = vld [vmem:[#allocation5] sm:$0xf]
    %v57 = vld [vmem:[#allocation5 + $0x1c] sm:$0xf]
    %v58 = vld [vmem:[#allocation5 + $0x38] sm:$0xf]
    %v59 = vld [vmem:[#allocation5 + $0x54] sm:$0xf]
    %v60 = vld [vmem:[#allocation5 + $0x70] sm:$0xf]
    %v61 = vld [vmem:[#allocation5 + $0x8c] sm:$0xf]
    %v62 = vld [vmem:[#allocation5 + $0xa8] sm:$0xf]
    %v63 = vld [vmem:[#allocation5 + $0xc4] sm:$0xf]
    %v64 = vld [vmem:[#allocation5 + $0xe0] sm:$0xf]
    %v65 = vld [vmem:[#allocation5 + $0xfc] sm:$0xf]
    %v66 = vld [vmem:[#allocation5 + $0x118] sm:$0xf]
    %v67 = vld [vmem:[#allocation5 + $0x134] sm:$0xf]
    %v68 = vld [vmem:[#allocation5 + $0x150] sm:$0xf]
    %v69 = vld [vmem:[#allocation5 + $0x16c] sm:$0xf]
    %v70 = vld [vmem:[#allocation5 + $0x188] sm:$0xf]
    %v71 = vld [vmem:[#allocation5 + $0x1a4] sm:$0xf]
    %v72 = vld [vmem:[%s2] sm:$0x1]
    %v74 = vlaneseq
    %v75 = vshrl.u32 %v74, 7
    %v76 = vsub.s32 0, %v75
    %v77 = vrot.slane %v72, %v76
    %v95 = vunpack.c.l.b16 %v56
    %v96 = vunpack.c.l.b16 %v57
    %v97 = vunpack.c.l.b16 %v58
    %v98 = vunpack.c.l.b16 %v59
    %v99 = vunpack.c.l.b16 %v60
    %v100 = vunpack.c.l.b16 %v61
    %v101 = vunpack.c.l.b16 %v62
    %v102 = vunpack.c.l.b16 %v63
    %v103 = vunpack.c.l.b16 %v64
    %v104 = vunpack.c.l.b16 %v65
    %v105 = vunpack.c.l.b16 %v66
    %v106 = vunpack.c.l.b16 %v67
    %v107 = vunpack.c.l.b16 %v68
    %v108 = vunpack.c.l.b16 %v69
    %v109 = vunpack.c.l.b16 %v70
    %v110 = vunpack.c.l.b16 %v71
    %v111 = vpack.c.b16 %v96, %v95
    %v112 = vpack.c.b16 %v98, %v97
    %v113 = vpack.c.b16 %v100, %v99
    %v114 = vpack.c.b16 %v102, %v101
    %v115 = vpack.c.b16 %v104, %v103
    %v116 = vpack.c.b16 %v106, %v105
    %v117 = vpack.c.b16 %v108, %v107
    %v118 = vpack.c.b16 %v110, %v109
    %127 = vmatprep.subr.bf16.mxu0 0
    %128 = vmatpush1.bf16.msra.mxu0 %v111
    %129 = vmatprep.subr.bf16.mxu0 0
    %130 = vmatpush1.bf16.msra.mxu0 %v112
    %131 = vmatprep.subr.bf16.mxu0 0
    %132 = vmatpush1.bf16.msra.mxu0 %v113
    %133 = vmatprep.subr.bf16.mxu0 0
    %134 = vmatpush1.bf16.msra.mxu0 %v114
    %135 = vmatprep.subr.bf16.mxu0 0
    %136 = vmatpush1.bf16.msra.mxu0 %v115
    %137 = vmatprep.subr.bf16.mxu0 0
    %138 = vmatpush1.bf16.msra.mxu0 %v116
    %139 = vmatprep.subr.bf16.mxu0 0
    %140 = vmatpush1.bf16.msra.mxu0 %v117
    %141 = vmatprep.subr.bf16.mxu0 0
    %142 = vmatpush1.bf16.msra.mxu0 %v118
    %143 = vmatprep.subr.bf16.mxu0 0
    %144 = vmatpush1.bf16.msra.mxu0 0
    %145 = vmatprep.subr.bf16.mxu0 0
    %146 = vmatpush1.bf16.msra.mxu0 0
    %147 = vmatprep.subr.bf16.mxu0 0
    %148 = vmatpush1.bf16.msra.mxu0 0
    %149 = vmatprep.subr.bf16.mxu0 0
    %150 = vmatpush1.bf16.msra.mxu0 0
    %151 = vmatprep.subr.bf16.mxu0 0
    %152 = vmatpush1.bf16.msra.mxu0 0
    %153 = vmatprep.subr.bf16.mxu0 0
    %154 = vmatpush1.bf16.msra.mxu0 0
    %155 = vmatprep.subr.bf16.mxu0 0
    %156 = vmatpush1.bf16.msra.mxu0 0
    %157 = vmatprep.subr.bf16.mxu0 0
    %158 = vmatpush1.bf16.msra.mxu0 0
    %159 = vmatprep.mubr.bf16.mxu0 0
    %160 = vmatmul.mubr.bf16.gmra.mrb[0].mxu0 %v52
    %v161 = vpop.f32.mrb[0].mxu0
    %v162 = vadd.f32 %v77, %v161
    %v163 = vpop.f32.mrb[0].mxu0
    %v164 = vpop.f32.mrb[0].mxu0
    %v165 = vadd.f32 %v77, %v164
    %v166 = vpop.f32.mrb[0].mxu0
    %167 = vmatprep.mubr.bf16.mxu0 0
    %168 = vmatmul.mubr.bf16.gmra.mrb[0].mxu0 %v53
    %v169 = vpop.f32.mrb[0].mxu0
    %v170 = vadd.f32 %v77, %v169
    %v171 = vpop.f32.mrb[0].mxu0
    %v172 = vpop.f32.mrb[0].mxu0
    %v173 = vadd.f32 %v77, %v172
    %v174 = vpop.f32.mrb[0].mxu0
    %175 = vmatprep.mubr.bf16.mxu0 0
    %176 = vmatmul.mubr.bf16.gmra.mrb[0].mxu0 %v54
    %v177 = vpop.f32.mrb[0].mxu0
    %v178 = vadd.f32 %v77, %v177
    %v179 = vpop.f32.mrb[0].mxu0
    %v180 = vpop.f32.mrb[0].mxu0
    %v181 = vadd.f32 %v77, %v180
    %v182 = vpop.f32.mrb[0].mxu0
    %183 = vmatprep.mubr.bf16.mxu0 0
    %184 = vmatmul.mubr.bf16.gmra.mrb[0].mxu0 %v55
    %v185 = vpop.f32.mrb[0].mxu0
    %v186 = vadd.f32 %v77, %v185
    %v187 = vpop.f32.mrb[0].mxu0
    %v188 = vpop.f32.mrb[0].mxu0
    %v189 = vadd.f32 %v77, %v188
    %v190 = vpop.f32.mrb[0].mxu0
    %191 = vdwg.mxu0
    %v192 = vmul.f32 %v162, 0.01
    %v193 = vmul.f32 %v165, 0.01
    %v194 = vmul.f32 %v170, 0.01
    %v195 = vmul.f32 %v173, 0.01
    %v196 = vmul.f32 %v178, 0.01
    %v197 = vmul.f32 %v181, 0.01
    %v198 = vmul.f32 %v186, 0.01
    %v199 = vmul.f32 %v189, 0.01
    %v200 = vmax.f32 %v162, %v192
    %v201 = vmax.f32 %v165, %v193
    %v202 = vmax.f32 %v170, %v194
    %v203 = vmax.f32 %v173, %v195
    %v204 = vmax.f32 %v178, %v196
    %v205 = vmax.f32 %v181, %v197
    %v206 = vmax.f32 %v186, %v198
    %v207 = vmax.f32 %v189, %v199
    %v208 = vpack.c.bf16 %v201, %v200
    %v209 = vpack.c.bf16 %v203, %v202
    %v210 = vpack.c.bf16 %v205, %v204
    %v211 = vpack.c.bf16 %v207, %v206
    %v212 = vld [vmem:[#allocation5 + $0x4] sm:$0xf]
    %v213 = vld [vmem:[#allocation5 + $0x20] sm:$0xf]
    %v214 = vld [vmem:[#allocation5 + $0x3c] sm:$0xf]
    %v215 = vld [vmem:[#allocation5 + $0x58] sm:$0xf]
    %v216 = vld [vmem:[#allocation5 + $0x74] sm:$0xf]
    %v217 = vld [vmem:[#allocation5 + $0x90] sm:$0xf]
    %v218 = vld [vmem:[#allocation5 + $0xac] sm:$0xf]
    %v219 = vld [vmem:[#allocation5 + $0xc8] sm:$0xf]
    %v220 = vld [vmem:[#allocation5 + $0xe4] sm:$0xf]
    %v221 = vld [vmem:[#allocation5 + $0x100] sm:$0xf]
    %v222 = vld [vmem:[#allocation5 + $0x11c] sm:$0xf]
    %v223 = vld [vmem:[#allocation5 + $0x138] sm:$0xf]
    %v224 = vld [vmem:[#allocation5 + $0x154] sm:$0xf]
    %v225 = vld [vmem:[#allocation5 + $0x170] sm:$0xf]
    %v226 = vld [vmem:[#allocation5 + $0x18c] sm:$0xf]
    %v227 = vld [vmem:[#allocation5 + $0x1a8] sm:$0xf]
    %v228 = vld [vmem:[%s2 + $0x1] sm:$0x1]
    %v230 = vlaneseq
    %v231 = vshrl.u32 %v230, 7
    %v232 = vsub.s32 0, %v231
    %v233 = vrot.slane %v228, %v232
    %v251 = vunpack.c.l.b16 %v212
    %v252 = vunpack.c.l.b16 %v213
    %v253 = vunpack.c.l.b16 %v214
    %v254 = vunpack.c.l.b16 %v215
    %v255 = vunpack.c.l.b16 %v216
    %v256 = vunpack.c.l.b16 %v217
    %v257 = vunpack.c.l.b16 %v218
    %v258 = vunpack.c.l.b16 %v219
    %v259 = vunpack.c.l.b16 %v220
    %v260 = vunpack.c.l.b16 %v221
    %v261 = vunpack.c.l.b16 %v222
    %v262 = vunpack.c.l.b16 %v223
    %v263 = vunpack.c.l.b16 %v224
    %v264 = vunpack.c.l.b16 %v225
    %v265 = vunpack.c.l.b16 %v226
    %v266 = vunpack.c.l.b16 %v227
    %v267 = vpack.c.b16 %v252, %v251
    %v268 = vpack.c.b16 %v254, %v253
    %v269 = vpack.c.b16 %v256, %v255
    %v270 = vpack.c.b16 %v258, %v257
    %v271 = vpack.c.b16 %v260, %v259
    %v272 = vpack.c.b16 %v262, %v261
    %v273 = vpack.c.b16 %v264, %v263
    %v274 = vpack.c.b16 %v266, %v265
    %283 = vmatprep.subr.bf16.mxu0 0
    %284 = vmatpush1.bf16.msra.mxu0 %v267
    %285 = vmatprep.subr.bf16.mxu0 0
    %286 = vmatpush1.bf16.msra.mxu0 %v268
    %287 = vmatprep.subr.bf16.mxu0 0
    %288 = vmatpush1.bf16.msra.mxu0 %v269
    %289 = vmatprep.subr.bf16.mxu0 0
    %290 = vmatpush1.bf16.msra.mxu0 %v270
    %291 = vmatprep.subr.bf16.mxu0 0
    %292 = vmatpush1.bf16.msra.mxu0 %v271
    %293 = vmatprep.subr.bf16.mxu0 0
    %294 = vmatpush1.bf16.msra.mxu0 %v272
    %295 = vmatprep.subr.bf16.mxu0 0
    %296 = vmatpush1.bf16.msra.mxu0 %v273
    %297 = vmatprep.subr.bf16.mxu0 0
    %298 = vmatpush1.bf16.msra.mxu0 %v274
    %299 = vmatprep.subr.bf16.mxu0 0
    %300 = vmatpush1.bf16.msra.mxu0 0
    %301 = vmatprep.subr.bf16.mxu0 0
    %302 = vmatpush1.bf16.msra.mxu0 0
    %303 = vmatprep.subr.bf16.mxu0 0
    %304 = vmatpush1.bf16.msra.mxu0 0
    %305 = vmatprep.subr.bf16.mxu0 0
    %306 = vmatpush1.bf16.msra.mxu0 0
    %307 = vmatprep.subr.bf16.mxu0 0
    %308 = vmatpush1.bf16.msra.mxu0 0
    %309 = vmatprep.subr.bf16.mxu0 0
    %310 = vmatpush1.bf16.msra.mxu0 0
    %311 = vmatprep.subr.bf16.mxu0 0
    %312 = vmatpush1.bf16.msra.mxu0 0
    %313 = vmatprep.subr.bf16.mxu0 0
    %314 = vmatpush1.bf16.msra.mxu0 0
    %315 = vmatprep.mubr.bf16.mxu0 0
    %316 = vmatmul.mubr.bf16.gmra.mrb[0].mxu0 %v208
    %v317 = vpop.f32.mrb[0].mxu0
    %v318 = vadd.f32 %v233, %v317
    %v319 = vpop.f32.mrb[0].mxu0
    %v320 = vpop.f32.mrb[0].mxu0
    %v321 = vadd.f32 %v233, %v320
    %v322 = vpop.f32.mrb[0].mxu0
    %323 = vmatprep.mubr.bf16.mxu0 0
    %324 = vmatmul.mubr.bf16.gmra.mrb[0].mxu0 %v209
    %v325 = vpop.f32.mrb[0].mxu0
    %v326 = vadd.f32 %v233, %v325
    %v327 = vpop.f32.mrb[0].mxu0
    %v328 = vpop.f32.mrb[0].mxu0
    %v329 = vadd.f32 %v233, %v328
    %v330 = vpop.f32.mrb[0].mxu0
    %331 = vmatprep.mubr.bf16.mxu0 0
    %332 = vmatmul.mubr.bf16.gmra.mrb[0].mxu0 %v210
    %v333 = vpop.f32.mrb[0].mxu0
    %v334 = vadd.f32 %v233, %v333
    %v335 = vpop.f32.mrb[0].mxu0
    %v336 = vpop.f32.mrb[0].mxu0
    %v337 = vadd.f32 %v233, %v336
    %v338 = vpop.f32.mrb[0].mxu0
    %339 = vmatprep.mubr.bf16.mxu0 0
    %340 = vmatmul.mubr.bf16.gmra.mrb[0].mxu0 %v211
    %v341 = vpop.f32.mrb[0].mxu0
    %v342 = vadd.f32 %v233, %v341
    %v343 = vpop.f32.mrb[0].mxu0
    %v344 = vpop.f32.mrb[0].mxu0
    %v345 = vadd.f32 %v233, %v344
    %v346 = vpop.f32.mrb[0].mxu0
    %347 = vdwg.mxu0
    %v348 = vmul.f32 %v318, 0.01
    %v349 = vmul.f32 %v321, 0.01
    %v350 = vmul.f32 %v326, 0.01
    %v351 = vmul.f32 %v329, 0.01
    %v352 = vmul.f32 %v334, 0.01
    %v353 = vmul.f32 %v337, 0.01
    %v354 = vmul.f32 %v342, 0.01
    %v355 = vmul.f32 %v345, 0.01
    %v356 = vmax.f32 %v318, %v348
    %v357 = vmax.f32 %v321, %v349
    %v358 = vmax.f32 %v326, %v350
    %v359 = vmax.f32 %v329, %v351
    %v360 = vmax.f32 %v334, %v352
    %v361 = vmax.f32 %v337, %v353
    %v362 = vmax.f32 %v342, %v354
    %v363 = vmax.f32 %v345, %v355
    %v364 = vpack.c.bf16 %v357, %v356
    %v365 = vpack.c.bf16 %v359, %v358
    %v366 = vpack.c.bf16 %v361, %v360
    %v367 = vpack.c.bf16 %v363, %v362
    %v368 = vld [vmem:[#allocation5 + $0x8] sm:$0xf]
    %v369 = vld [vmem:[#allocation5 + $0x24] sm:$0xf]
    %v370 = vld [vmem:[#allocation5 + $0x40] sm:$0xf]
    %v371 = vld [vmem:[#allocation5 + $0x5c] sm:$0xf]
    %v372 = vld [vmem:[#allocation5 + $0x78] sm:$0xf]
    %v373 = vld [vmem:[#allocation5 + $0x94] sm:$0xf]
    %v374 = vld [vmem:[#allocation5 + $0xb0] sm:$0xf]
    %v375 = vld [vmem:[#allocation5 + $0xcc] sm:$0xf]
    %v376 = vld [vmem:[#allocation5 + $0xe8] sm:$0xf]
    %v377 = vld [vmem:[#allocation5 + $0x104] sm:$0xf]
    %v378 = vld [vmem:[#allocation5 + $0x120] sm:$0xf]
    %v379 = vld [vmem:[#allocation5 + $0x13c] sm:$0xf]
    %v380 = vld [vmem:[#allocation5 + $0x158] sm:$0xf]
    %v381 = vld [vmem:[#allocation5 + $0x174] sm:$0xf]
    %v382 = vld [vmem:[#allocation5 + $0x190] sm:$0xf]
    %v383 = vld [vmem:[#allocation5 + $0x1ac] sm:$0xf]
    %v384 = vld [vmem:[%s2 + $0x2] sm:$0x1]
    %v386 = vlaneseq
    %v387 = vshrl.u32 %v386, 7
    %v388 = vsub.s32 0, %v387
    %v389 = vrot.slane %v384, %v388
    %v407 = vunpack.c.l.b16 %v368
    %v408 = vunpack.c.l.b16 %v369
    %v409 = vunpack.c.l.b16 %v370
    %v410 = vunpack.c.l.b16 %v371
    %v411 = vunpack.c.l.b16 %v372
    %v412 = vunpack.c.l.b16 %v373
    %v413 = vunpack.c.l.b16 %v374
    %v414 = vunpack.c.l.b16 %v375
    %v415 = vunpack.c.l.b16 %v376
    %v416 = vunpack.c.l.b16 %v377
    %v417 = vunpack.c.l.b16 %v378
    %v418 = vunpack.c.l.b16 %v379
    %v419 = vunpack.c.l.b16 %v380
    %v420 = vunpack.c.l.b16 %v381
    %v421 = vunpack.c.l.b16 %v382
    %v422 = vunpack.c.l.b16 %v383
    %v423 = vpack.c.b16 %v408, %v407
    %v424 = vpack.c.b16 %v410, %v409
    %v425 = vpack.c.b16 %v412, %v411
    %v426 = vpack.c.b16 %v414, %v413
    %v427 = vpack.c.b16 %v416, %v415
    %v428 = vpack.c.b16 %v418, %v417
    %v429 = vpack.c.b16 %v420, %v419
    %v430 = vpack.c.b16 %v422, %v421
    %439 = vmatprep.subr.bf16.mxu0 0
    %440 = vmatpush1.bf16.msra.mxu0 %v423
    %441 = vmatprep.subr.bf16.mxu0 0
    %442 = vmatpush1.bf16.msra.mxu0 %v424
    %443 = vmatprep.subr.bf16.mxu0 0
    %444 = vmatpush1.bf16.msra.mxu0 %v425
    %445 = vmatprep.subr.bf16.mxu0 0
    %446 = vmatpush1.bf16.msra.mxu0 %v426
    %447 = vmatprep.subr.bf16.mxu0 0
    %448 = vmatpush1.bf16.msra.mxu0 %v427
    %449 = vmatprep.subr.bf16.mxu0 0
    %450 = vmatpush1.bf16.msra.mxu0 %v428
    %451 = vmatprep.subr.bf16.mxu0 0
    %452 = vmatpush1.bf16.msra.mxu0 %v429
    %453 = vmatprep.subr.bf16.mxu0 0
    %454 = vmatpush1.bf16.msra.mxu0 %v430
    %455 = vmatprep.subr.bf16.mxu0 0
    %456 = vmatpush1.bf16.msra.mxu0 0
    %457 = vmatprep.subr.bf16.mxu0 0
    %458 = vmatpush1.bf16.msra.mxu0 0
    %459 = vmatprep.subr.bf16.mxu0 0
    %460 = vmatpush1.bf16.msra.mxu0 0
    %461 = vmatprep.subr.bf16.mxu0 0
    %462 = vmatpush1.bf16.msra.mxu0 0
    %463 = vmatprep.subr.bf16.mxu0 0
    %464 = vmatpush1.bf16.msra.mxu0 0
    %465 = vmatprep.subr.bf16.mxu0 0
    %466 = vmatpush1.bf16.msra.mxu0 0
    %467 = vmatprep.subr.bf16.mxu0 0
    %468 = vmatpush1.bf16.msra.mxu0 0
    %469 = vmatprep.subr.bf16.mxu0 0
    %470 = vmatpush1.bf16.msra.mxu0 0
    %471 = vmatprep.mubr.bf16.mxu0 0
    %472 = vmatmul.mubr.bf16.gmra.mrb[0].mxu0 %v364
    %v473 = vpop.f32.mrb[0].mxu0
    %v474 = vadd.f32 %v389, %v473
    %v475 = vpop.f32.mrb[0].mxu0
    %v476 = vpop.f32.mrb[0].mxu0
    %v477 = vadd.f32 %v389, %v476
    %v478 = vpop.f32.mrb[0].mxu0
    %479 = vmatprep.mubr.bf16.mxu0 0
    %480 = vmatmul.mubr.bf16.gmra.mrb[0].mxu0 %v365
    %v481 = vpop.f32.mrb[0].mxu0
    %v482 = vadd.f32 %v389, %v481
    %v483 = vpop.f32.mrb[0].mxu0
    %v484 = vpop.f32.mrb[0].mxu0
    %v485 = vadd.f32 %v389, %v484
    %v486 = vpop.f32.mrb[0].mxu0
    %487 = vmatprep.mubr.bf16.mxu0 0
    %488 = vmatmul.mubr.bf16.gmra.mrb[0].mxu0 %v366
    %v489 = vpop.f32.mrb[0].mxu0
    %v490 = vadd.f32 %v389, %v489
    %v491 = vpop.f32.mrb[0].mxu0
    %v492 = vpop.f32.mrb[0].mxu0
    %v493 = vadd.f32 %v389, %v492
    %v494 = vpop.f32.mrb[0].mxu0
    %495 = vmatprep.mubr.bf16.mxu0 0
    %496 = vmatmul.mubr.bf16.gmra.mrb[0].mxu0 %v367
    %v497 = vpop.f32.mrb[0].mxu0
    %v498 = vadd.f32 %v389, %v497
    %v499 = vpop.f32.mrb[0].mxu0
    %v500 = vpop.f32.mrb[0].mxu0
    %v501 = vadd.f32 %v389, %v500
    %v502 = vpop.f32.mrb[0].mxu0
    %503 = vdwg.mxu0
    %v504 = vmul.f32 %v474, 0.01
    %v505 = vmul.f32 %v477, 0.01
    %v506 = vmul.f32 %v482, 0.01
    %v507 = vmul.f32 %v485, 0.01
    %v508 = vmul.f32 %v490, 0.01
    %v509 = vmul.f32 %v493, 0.01
    %v510 = vmul.f32 %v498, 0.01
    %v511 = vmul.f32 %v501, 0.01
    %v512 = vmax.f32 %v474, %v504
    %v513 = vmax.f32 %v477, %v505
    %v514 = vmax.f32 %v482, %v506
    %v515 = vmax.f32 %v485, %v507
    %v516 = vmax.f32 %v490, %v508
    %v517 = vmax.f32 %v493, %v509
    %v518 = vmax.f32 %v498, %v510
    %v519 = vmax.f32 %v501, %v511
    %v520 = vpack.c.bf16 %v513, %v512
    %v521 = vpack.c.bf16 %v515, %v514
    %v522 = vpack.c.bf16 %v517, %v516
    %v523 = vpack.c.bf16 %v519, %v518
    %v524 = vld [vmem:[#allocation5 + $0xc] sm:$0xf]
    %v525 = vld [vmem:[#allocation5 + $0x28] sm:$0xf]
    %v526 = vld [vmem:[#allocation5 + $0x44] sm:$0xf]
    %v527 = vld [vmem:[#allocation5 + $0x60] sm:$0xf]
    %v528 = vld [vmem:[#allocation5 + $0x7c] sm:$0xf]
    %v529 = vld [vmem:[#allocation5 + $0x98] sm:$0xf]
    %v530 = vld [vmem:[#allocation5 + $0xb4] sm:$0xf]
    %v531 = vld [vmem:[#allocation5 + $0xd0] sm:$0xf]
    %v532 = vld [vmem:[#allocation5 + $0xec] sm:$0xf]
    %v533 = vld [vmem:[#allocation5 + $0x108] sm:$0xf]
    %v534 = vld [vmem:[#allocation5 + $0x124] sm:$0xf]
    %v535 = vld [vmem:[#allocation5 + $0x140] sm:$0xf]
    %v536 = vld [vmem:[#allocation5 + $0x15c] sm:$0xf]
    %v537 = vld [vmem:[#allocation5 + $0x178] sm:$0xf]
    %v538 = vld [vmem:[#allocation5 + $0x194] sm:$0xf]
    %v539 = vld [vmem:[#allocation5 + $0x1b0] sm:$0xf]
    %v540 = vld [vmem:[%s2 + $0x3] sm:$0x1]
    %v542 = vlaneseq
    %v543 = vshrl.u32 %v542, 7
    %v544 = vsub.s32 0, %v543
    %v545 = vrot.slane %v540, %v544
    %v563 = vunpack.c.l.b16 %v524
    %v564 = vunpack.c.l.b16 %v525
    %v565 = vunpack.c.l.b16 %v526
    %v566 = vunpack.c.l.b16 %v527
    %v567 = vunpack.c.l.b16 %v528
    %v568 = vunpack.c.l.b16 %v529
    %v569 = vunpack.c.l.b16 %v530
    %v570 = vunpack.c.l.b16 %v531
    %v571 = vunpack.c.l.b16 %v532
    %v572 = vunpack.c.l.b16 %v533
    %v573 = vunpack.c.l.b16 %v534
    %v574 = vunpack.c.l.b16 %v535
    %v575 = vunpack.c.l.b16 %v536
    %v576 = vunpack.c.l.b16 %v537
    %v577 = vunpack.c.l.b16 %v538
    %v578 = vunpack.c.l.b16 %v539
    %v579 = vpack.c.b16 %v564, %v563
    %v580 = vpack.c.b16 %v566, %v565
    %v581 = vpack.c.b16 %v568, %v567
    %v582 = vpack.c.b16 %v570, %v569
    %v583 = vpack.c.b16 %v572, %v571
    %v584 = vpack.c.b16 %v574, %v573
    %v585 = vpack.c.b16 %v576, %v575
    %v586 = vpack.c.b16 %v578, %v577
    %595 = vmatprep.subr.bf16.mxu0 0
    %596 = vmatpush1.bf16.msra.mxu0 %v579
    %597 = vmatprep.subr.bf16.mxu0 0
    %598 = vmatpush1.bf16.msra.mxu0 %v580
    %599 = vmatprep.subr.bf16.mxu0 0
    %600 = vmatpush1.bf16.msra.mxu0 %v581
    %601 = vmatprep.subr.bf16.mxu0 0
    %602 = vmatpush1.bf16.msra.mxu0 %v582
    %603 = vmatprep.subr.bf16.mxu0 0
    %604 = vmatpush1.bf16.msra.mxu0 %v583
    %605 = vmatprep.subr.bf16.mxu0 0
    %606 = vmatpush1.bf16.msra.mxu0 %v584
    %607 = vmatprep.subr.bf16.mxu0 0
    %608 = vmatpush1.bf16.msra.mxu0 %v585
    %609 = vmatprep.subr.bf16.mxu0 0
    %610 = vmatpush1.bf16.msra.mxu0 %v586
    %611 = vmatprep.subr.bf16.mxu0 0
    %612 = vmatpush1.bf16.msra.mxu0 0
    %613 = vmatprep.subr.bf16.mxu0 0
    %614 = vmatpush1.bf16.msra.mxu0 0
    %615 = vmatprep.subr.bf16.mxu0 0
    %616 = vmatpush1.bf16.msra.mxu0 0
    %617 = vmatprep.subr.bf16.mxu0 0
    %618 = vmatpush1.bf16.msra.mxu0 0
    %619 = vmatprep.subr.bf16.mxu0 0
    %620 = vmatpush1.bf16.msra.mxu0 0
    %621 = vmatprep.subr.bf16.mxu0 0
    %622 = vmatpush1.bf16.msra.mxu0 0
    %623 = vmatprep.subr.bf16.mxu0 0
    %624 = vmatpush1.bf16.msra.mxu0 0
    %625 = vmatprep.subr.bf16.mxu0 0
    %626 = vmatpush1.bf16.msra.mxu0 0
    %627 = vmatprep.mubr.bf16.mxu0 0
    %628 = vmatmul.mubr.bf16.gmra.mrb[0].mxu0 %v520
    %v629 = vpop.f32.mrb[0].mxu0
    %v630 = vadd.f32 %v545, %v629
    %v631 = vpop.f32.mrb[0].mxu0
    %v632 = vpop.f32.mrb[0].mxu0
    %v633 = vadd.f32 %v545, %v632
    %v634 = vpop.f32.mrb[0].mxu0
    %635 = vmatprep.mubr.bf16.mxu0 0
    %636 = vmatmul.mubr.bf16.gmra.mrb[0].mxu0 %v521
    %v637 = vpop.f32.mrb[0].mxu0
    %v638 = vadd.f32 %v545, %v637
    %v639 = vpop.f32.mrb[0].mxu0
    %v640 = vpop.f32.mrb[0].mxu0
    %v641 = vadd.f32 %v545, %v640
    %v642 = vpop.f32.mrb[0].mxu0
    %643 = vmatprep.mubr.bf16.mxu0 0
    %644 = vmatmul.mubr.bf16.gmra.mrb[0].mxu0 %v522
    %v645 = vpop.f32.mrb[0].mxu0
    %v646 = vadd.f32 %v545, %v645
    %v647 = vpop.f32.mrb[0].mxu0
    %v648 = vpop.f32.mrb[0].mxu0
    %v649 = vadd.f32 %v545, %v648
    %v650 = vpop.f32.mrb[0].mxu0
    %651 = vmatprep.mubr.bf16.mxu0 0
    %652 = vmatmul.mubr.bf16.gmra.mrb[0].mxu0 %v523
    %v653 = vpop.f32.mrb[0].mxu0
    %v654 = vadd.f32 %v545, %v653
    %v655 = vpop.f32.mrb[0].mxu0
    %v656 = vpop.f32.mrb[0].mxu0
    %v657 = vadd.f32 %v545, %v656
    %v658 = vpop.f32.mrb[0].mxu0
    %659 = vdwg.mxu0
    %v660 = vmul.f32 %v630, 0.01
    %v661 = vmul.f32 %v633, 0.01
    %v662 = vmul.f32 %v638, 0.01
    %v663 = vmul.f32 %v641, 0.01
    %v664 = vmul.f32 %v646, 0.01
    %v665 = vmul.f32 %v649, 0.01
    %v666 = vmul.f32 %v654, 0.01
    %v667 = vmul.f32 %v657, 0.01
    %v668 = vmax.f32 %v630, %v660
    %v669 = vmax.f32 %v633, %v661
    %v670 = vmax.f32 %v638, %v662
    %v671 = vmax.f32 %v641, %v663
    %v672 = vmax.f32 %v646, %v664
    %v673 = vmax.f32 %v649, %v665
    %v674 = vmax.f32 %v654, %v666
    %v675 = vmax.f32 %v657, %v667
    %v676 = vpack.c.bf16 %v669, %v668
    %v677 = vpack.c.bf16 %v671, %v670
    %v678 = vpack.c.bf16 %v673, %v672
    %v679 = vpack.c.bf16 %v675, %v674
    %v680 = vld [vmem:[#allocation5 + $0x10] sm:$0xf]
    %v681 = vld [vmem:[#allocation5 + $0x2c] sm:$0xf]
    %v682 = vld [vmem:[#allocation5 + $0x48] sm:$0xf]
    %v683 = vld [vmem:[#allocation5 + $0x64] sm:$0xf]
    %v684 = vld [vmem:[#allocation5 + $0x80] sm:$0xf]
    %v685 = vld [vmem:[#allocation5 + $0x9c] sm:$0xf]
    %v686 = vld [vmem:[#allocation5 + $0xb8] sm:$0xf]
    %v687 = vld [vmem:[#allocation5 + $0xd4] sm:$0xf]
    %v688 = vld [vmem:[#allocation5 + $0xf0] sm:$0xf]
    %v689 = vld [vmem:[#allocation5 + $0x10c] sm:$0xf]
    %v690 = vld [vmem:[#allocation5 + $0x128] sm:$0xf]
    %v691 = vld [vmem:[#allocation5 + $0x144] sm:$0xf]
    %v692 = vld [vmem:[#allocation5 + $0x160] sm:$0xf]
    %v693 = vld [vmem:[#allocation5 + $0x17c] sm:$0xf]
    %v694 = vld [vmem:[#allocation5 + $0x198] sm:$0xf]
    %v695 = vld [vmem:[#allocation5 + $0x1b4] sm:$0xf]
    %v696 = vld [vmem:[%s2 + $0x4] sm:$0x1]
    %v698 = vlaneseq
    %v699 = vshrl.u32 %v698, 7
    %v700 = vsub.s32 0, %v699
    %v701 = vrot.slane %v696, %v700
    %v719 = vunpack.c.l.b16 %v680
    %v720 = vunpack.c.l.b16 %v681
    %v721 = vunpack.c.l.b16 %v682
    %v722 = vunpack.c.l.b16 %v683
    %v723 = vunpack.c.l.b16 %v684
    %v724 = vunpack.c.l.b16 %v685
    %v725 = vunpack.c.l.b16 %v686
    %v726 = vunpack.c.l.b16 %v687
    %v727 = vunpack.c.l.b16 %v688
    %v728 = vunpack.c.l.b16 %v689
    %v729 = vunpack.c.l.b16 %v690
    %v730 = vunpack.c.l.b16 %v691
    %v731 = vunpack.c.l.b16 %v692
    %v732 = vunpack.c.l.b16 %v693
    %v733 = vunpack.c.l.b16 %v694
    %v734 = vunpack.c.l.b16 %v695
    %v735 = vpack.c.b16 %v720, %v719
    %v736 = vpack.c.b16 %v722, %v721
    %v737 = vpack.c.b16 %v724, %v723
    %v738 = vpack.c.b16 %v726, %v725
    %v739 = vpack.c.b16 %v728, %v727
    %v740 = vpack.c.b16 %v730, %v729
    %v741 = vpack.c.b16 %v732, %v731
    %v742 = vpack.c.b16 %v734, %v733
    %751 = vmatprep.subr.bf16.mxu0 0
    %752 = vmatpush1.bf16.msra.mxu0 %v735
    %753 = vmatprep.subr.bf16.mxu0 0
    %754 = vmatpush1.bf16.msra.mxu0 %v736
    %755 = vmatprep.subr.bf16.mxu0 0
    %756 = vmatpush1.bf16.msra.mxu0 %v737
    %757 = vmatprep.subr.bf16.mxu0 0
    %758 = vmatpush1.bf16.msra.mxu0 %v738
    %759 = vmatprep.subr.bf16.mxu0 0
    %760 = vmatpush1.bf16.msra.mxu0 %v739
    %761 = vmatprep.subr.bf16.mxu0 0
    %762 = vmatpush1.bf16.msra.mxu0 %v740
    %763 = vmatprep.subr.bf16.mxu0 0
    %764 = vmatpush1.bf16.msra.mxu0 %v741
    %765 = vmatprep.subr.bf16.mxu0 0
    %766 = vmatpush1.bf16.msra.mxu0 %v742
    %767 = vmatprep.subr.bf16.mxu0 0
    %768 = vmatpush1.bf16.msra.mxu0 0
    %769 = vmatprep.subr.bf16.mxu0 0
    %770 = vmatpush1.bf16.msra.mxu0 0
    %771 = vmatprep.subr.bf16.mxu0 0
    %772 = vmatpush1.bf16.msra.mxu0 0
    %773 = vmatprep.subr.bf16.mxu0 0
    %774 = vmatpush1.bf16.msra.mxu0 0
    %775 = vmatprep.subr.bf16.mxu0 0
    %776 = vmatpush1.bf16.msra.mxu0 0
    %777 = vmatprep.subr.bf16.mxu0 0
    %778 = vmatpush1.bf16.msra.mxu0 0
    %779 = vmatprep.subr.bf16.mxu0 0
    %780 = vmatpush1.bf16.msra.mxu0 0
    %781 = vmatprep.subr.bf16.mxu0 0
    %782 = vmatpush1.bf16.msra.mxu0 0
    %783 = vmatprep.mubr.bf16.mxu0 0
    %784 = vmatmul.mubr.bf16.gmra.mrb[0].mxu0 %v676
    %v785 = vpop.f32.mrb[0].mxu0
    %v786 = vadd.f32 %v701, %v785
    %v787 = vpop.f32.mrb[0].mxu0
    %v788 = vpop.f32.mrb[0].mxu0
    %v789 = vadd.f32 %v701, %v788
    %v790 = vpop.f32.mrb[0].mxu0
    %791 = vmatprep.mubr.bf16.mxu0 0
    %792 = vmatmul.mubr.bf16.gmra.mrb[0].mxu0 %v677
    %v793 = vpop.f32.mrb[0].mxu0
    %v794 = vadd.f32 %v701, %v793
    %v795 = vpop.f32.mrb[0].mxu0
    %v796 = vpop.f32.mrb[0].mxu0
    %v797 = vadd.f32 %v701, %v796
    %v798 = vpop.f32.mrb[0].mxu0
    %799 = vmatprep.mubr.bf16.mxu0 0
    %800 = vmatmul.mubr.bf16.gmra.mrb[0].mxu0 %v678
    %v801 = vpop.f32.mrb[0].mxu0
    %v802 = vadd.f32 %v701, %v801
    %v803 = vpop.f32.mrb[0].mxu0
    %v804 = vpop.f32.mrb[0].mxu0
    %v805 = vadd.f32 %v701, %v804
    %v806 = vpop.f32.mrb[0].mxu0
    %807 = vmatprep.mubr.bf16.mxu0 0
    %808 = vmatmul.mubr.bf16.gmra.mrb[0].mxu0 %v679
    %v809 = vpop.f32.mrb[0].mxu0
    %v810 = vadd.f32 %v701, %v809
    %v811 = vpop.f32.mrb[0].mxu0
    %v812 = vpop.f32.mrb[0].mxu0
    %v813 = vadd.f32 %v701, %v812
    %v814 = vpop.f32.mrb[0].mxu0
    %815 = vdwg.mxu0
    %v816 = vmul.f32 %v786, 0.01
    %v817 = vmul.f32 %v789, 0.01
    %v818 = vmul.f32 %v794, 0.01
    %v819 = vmul.f32 %v797, 0.01
    %v820 = vmul.f32 %v802, 0.01
    %v821 = vmul.f32 %v805, 0.01
    %v822 = vmul.f32 %v810, 0.01
    %v823 = vmul.f32 %v813, 0.01
    %v824 = vmax.f32 %v786, %v816
    %v825 = vmax.f32 %v789, %v817
    %v826 = vmax.f32 %v794, %v818
    %v827 = vmax.f32 %v797, %v819
    %v828 = vmax.f32 %v802, %v820
    %v829 = vmax.f32 %v805, %v821
    %v830 = vmax.f32 %v810, %v822
    %v831 = vmax.f32 %v813, %v823
    %v832 = vpack.c.bf16 %v825, %v824
    %v833 = vpack.c.bf16 %v827, %v826
    %v834 = vpack.c.bf16 %v829, %v828
    %v835 = vpack.c.bf16 %v831, %v830
    %v836 = vld [vmem:[#allocation5 + $0x14] sm:$0xff]
    %v837 = vld [vmem:[#allocation5 + $0x30] sm:$0xff]
    %v838 = vld [vmem:[#allocation5 + $0x4c] sm:$0xff]
    %v839 = vld [vmem:[#allocation5 + $0x68] sm:$0xff]
    %v840 = vld [vmem:[#allocation5 + $0x84] sm:$0xff]
    %v841 = vld [vmem:[#allocation5 + $0xa0] sm:$0xff]
    %v842 = vld [vmem:[#allocation5 + $0xbc] sm:$0xff]
    %v843 = vld [vmem:[#allocation5 + $0xd8] sm:$0xff]
    %v844 = vld [vmem:[#allocation5 + $0xf4] sm:$0xff]
    %v845 = vld [vmem:[#allocation5 + $0x110] sm:$0xff]
    %v846 = vld [vmem:[#allocation5 + $0x12c] sm:$0xff]
    %v847 = vld [vmem:[#allocation5 + $0x148] sm:$0xff]
    %v848 = vld [vmem:[#allocation5 + $0x164] sm:$0xff]
    %v849 = vld [vmem:[#allocation5 + $0x180] sm:$0xff]
    %v850 = vld [vmem:[#allocation5 + $0x19c] sm:$0xff]
    %v851 = vld [vmem:[#allocation5 + $0x1b8] sm:$0xff]
    %v852 = vld [vmem:[%s2 + $0x5] sm:$0x3]
    %v854 = vlaneseq
    %v855 = vshrl.u32 %v854, 7
    %v856 = vsub.s32 0, %v855
    %v857 = vrot.slane %v852, %v856
    %v858 = vlaneseq
    %v859 = vshrl.u32 %v858, 7
    %v860 = vsub.s32 1, %v859
    %v861 = vrot.slane %v852, %v860
    %v880 = vunpack.c.l.b16 %v836
    %v881 = vunpack.c.h.b16 %v836
    %v882 = vunpack.c.l.b16 %v837
    %v883 = vunpack.c.h.b16 %v837
    %v884 = vunpack.c.l.b16 %v838
    %v885 = vunpack.c.h.b16 %v838
    %v886 = vunpack.c.l.b16 %v839
    %v887 = vunpack.c.h.b16 %v839
    %v888 = vunpack.c.l.b16 %v840
    %v889 = vunpack.c.h.b16 %v840
    %v890 = vunpack.c.l.b16 %v841
    %v891 = vunpack.c.h.b16 %v841
    %v892 = vunpack.c.l.b16 %v842
    %v893 = vunpack.c.h.b16 %v842
    %v894 = vunpack.c.l.b16 %v843
    %v895 = vunpack.c.h.b16 %v843
    %v896 = vunpack.c.l.b16 %v844
    %v897 = vunpack.c.h.b16 %v844
    %v898 = vunpack.c.l.b16 %v845
    %v899 = vunpack.c.h.b16 %v845
    %v900 = vunpack.c.l.b16 %v846
    %v901 = vunpack.c.h.b16 %v846
    %v902 = vunpack.c.l.b16 %v847
    %v903 = vunpack.c.h.b16 %v847
    %v904 = vunpack.c.l.b16 %v848
    %v905 = vunpack.c.h.b16 %v848
    %v906 = vunpack.c.l.b16 %v849
    %v907 = vunpack.c.h.b16 %v849
    %v908 = vunpack.c.l.b16 %v850
    %v909 = vunpack.c.h.b16 %v850
    %v910 = vunpack.c.l.b16 %v851
    %v911 = vunpack.c.h.b16 %v851
    %v912 = vpack.c.b16 %v882, %v880
    %v913 = vpack.c.b16 %v883, %v881
    %v914 = vpack.c.b16 %v886, %v884
    %v915 = vpack.c.b16 %v887, %v885
    %v916 = vpack.c.b16 %v890, %v888
    %v917 = vpack.c.b16 %v891, %v889
    %v918 = vpack.c.b16 %v894, %v892
    %v919 = vpack.c.b16 %v895, %v893
    %v920 = vpack.c.b16 %v898, %v896
    %v921 = vpack.c.b16 %v899, %v897
    %v922 = vpack.c.b16 %v902, %v900
    %v923 = vpack.c.b16 %v903, %v901
    %v924 = vpack.c.b16 %v906, %v904
    %v925 = vpack.c.b16 %v907, %v905
    %v926 = vpack.c.b16 %v910, %v908
    %v927 = vpack.c.b16 %v911, %v909
    %944 = vmatprep.subr.bf16.mxu0 %v913
    %945 = vmatpush1.bf16.msra.mxu0 %v912
    %946 = vmatprep.subr.bf16.mxu0 %v915
    %947 = vmatpush1.bf16.msra.mxu0 %v914
    %948 = vmatprep.subr.bf16.mxu0 %v917
    %949 = vmatpush1.bf16.msra.mxu0 %v916
    %950 = vmatprep.subr.bf16.mxu0 %v919
    %951 = vmatpush1.bf16.msra.mxu0 %v918
    %952 = vmatprep.subr.bf16.mxu0 %v921
    %953 = vmatpush1.bf16.msra.mxu0 %v920
    %954 = vmatprep.subr.bf16.mxu0 %v923
    %955 = vmatpush1.bf16.msra.mxu0 %v922
    %956 = vmatprep.subr.bf16.mxu0 %v925
    %957 = vmatpush1.bf16.msra.mxu0 %v924
    %958 = vmatprep.subr.bf16.mxu0 %v927
    %959 = vmatpush1.bf16.msra.mxu0 %v926
    %960 = vmatprep.subr.bf16.mxu0 0
    %961 = vmatpush1.bf16.msra.mxu0 0
    %962 = vmatprep.subr.bf16.mxu0 0
    %963 = vmatpush1.bf16.msra.mxu0 0
    %964 = vmatprep.subr.bf16.mxu0 0
    %965 = vmatpush1.bf16.msra.mxu0 0
    %966 = vmatprep.subr.bf16.mxu0 0
    %967 = vmatpush1.bf16.msra.mxu0 0
    %968 = vmatprep.subr.bf16.mxu0 0
    %969 = vmatpush1.bf16.msra.mxu0 0
    %970 = vmatprep.subr.bf16.mxu0 0
    %971 = vmatpush1.bf16.msra.mxu0 0
    %972 = vmatprep.subr.bf16.mxu0 0
    %973 = vmatpush1.bf16.msra.mxu0 0
    %974 = vmatprep.subr.bf16.mxu0 0
    %975 = vmatpush1.bf16.msra.mxu0 0
    %976 = vmatprep.mubr.bf16.mxu0 0
    %977 = vmatmul.mubr.bf16.gmra.mrb[0].mxu0 %v832
    %v978 = vpop.f32.mrb[0].mxu0
    %v979 = vadd.f32 %v857, %v978
    %v980 = vpop.f32.mrb[0].mxu0
    %v981 = vadd.f32 %v861, %v980
    %v982 = vpop.f32.mrb[0].mxu0
    %v983 = vadd.f32 %v857, %v982
    %v984 = vpop.f32.mrb[0].mxu0
    %v985 = vadd.f32 %v861, %v984
    %986 = vmatprep.mubr.bf16.mxu0 0
    %987 = vmatmul.mubr.bf16.gmra.mrb[0].mxu0 %v833
    %v988 = vpop.f32.mrb[0].mxu0
    %v989 = vadd.f32 %v857, %v988
    %v990 = vpop.f32.mrb[0].mxu0
    %v991 = vadd.f32 %v861, %v990
    %v992 = vpop.f32.mrb[0].mxu0
    %v993 = vadd.f32 %v857, %v992
    %v994 = vpop.f32.mrb[0].mxu0
    %v995 = vadd.f32 %v861, %v994
    %996 = vmatprep.mubr.bf16.mxu0 0
    %997 = vmatmul.mubr.bf16.gmra.mrb[0].mxu0 %v834
    %v998 = vpop.f32.mrb[0].mxu0
    %v999 = vadd.f32 %v857, %v998
    %v1000 = vpop.f32.mrb[0].mxu0
    %v1001 = vadd.f32 %v861, %v1000
    %v1002 = vpop.f32.mrb[0].mxu0
    %v1003 = vadd.f32 %v857, %v1002
    %v1004 = vpop.f32.mrb[0].mxu0
    %v1005 = vadd.f32 %v861, %v1004
    %1006 = vmatprep.mubr.bf16.mxu0 0
    %1007 = vmatmul.mubr.bf16.gmra.mrb[0].mxu0 %v835
    %v1008 = vpop.f32.mrb[0].mxu0
    %v1009 = vadd.f32 %v857, %v1008
    %v1010 = vpop.f32.mrb[0].mxu0
    %v1011 = vadd.f32 %v861, %v1010
    %v1012 = vpop.f32.mrb[0].mxu0
    %v1013 = vadd.f32 %v857, %v1012
    %v1014 = vpop.f32.mrb[0].mxu0
    %v1015 = vadd.f32 %v861, %v1014
    %1016 = vdwg.mxu0
    %v1017 = vtanh.pop %v979
    %v1018 = vtanh.pop %v983
    %v1019 = vtanh.pop %v989
    %v1020 = vtanh.pop %v993
    %v1021 = vtanh.pop %v999
    %v1022 = vtanh.pop %v1003
    %v1023 = vtanh.pop %v1009
    %v1024 = vtanh.pop %v1013
    %v1025 = vmul.f32 %v1017, 1.5
    %v1026 = vmul.f32 %v1018, 1.5
    %v1027 = vmul.f32 %v1019, 1.5
    %v1028 = vmul.f32 %v1020, 1.5
    %v1029 = vmul.f32 %v1021, 1.5
    %v1030 = vmul.f32 %v1022, 1.5
    %v1031 = vmul.f32 %v1023, 1.5
    %v1032 = vmul.f32 %v1024, 1.5
    %1033 = vst [vmem:[#allocation7] sm:$0xff] %v1025
    %1034 = vst [vmem:[#allocation7 + $0x10] sm:$0xff] %v1026
    %1035 = vst [vmem:[#allocation7 + $0x20] sm:$0xff] %v1027
    %1036 = vst [vmem:[#allocation7 + $0x30] sm:$0xff] %v1028
    %1037 = vst [vmem:[#allocation7 + $0x40] sm:$0xff] %v1029
    %1038 = vst [vmem:[#allocation7 + $0x50] sm:$0xff] %v1030
    %1039 = vst [vmem:[#allocation7 + $0x60] sm:$0xff] %v1031
    %1040 = vst [vmem:[#allocation7 + $0x70] sm:$0xff] %v1032
    %v1041 = vmax.f32 %v981, 0.0
    %v1042 = vmax.f32 %v985, 0.0
    %v1043 = vmax.f32 %v991, 0.0
    %v1044 = vmax.f32 %v995, 0.0
    %v1045 = vmax.f32 %v1001, 0.0
    %v1046 = vmax.f32 %v1005, 0.0
    %v1047 = vmax.f32 %v1011, 0.0
    %v1048 = vmax.f32 %v1015, 0.0
    %vm1049 = vcmp.ne.f32.partialorder %v981, %v981
    %vm1050 = vcmp.ne.f32.partialorder %v985, %v985
    %vm1051 = vcmp.ne.f32.partialorder %v991, %v991
    %vm1052 = vcmp.ne.f32.partialorder %v995, %v995
    %vm1053 = vcmp.ne.f32.partialorder %v1001, %v1001
    %vm1054 = vcmp.ne.f32.partialorder %v1005, %v1005
    %vm1055 = vcmp.ne.f32.partialorder %v1011, %v1011
    %vm1056 = vcmp.ne.f32.partialorder %v1015, %v1015
    %v1057 = vadd.f32 %v981, 0.0
    %v1058 = vadd.f32 %v985, 0.0
    %v1059 = vadd.f32 %v991, 0.0
    %v1060 = vadd.f32 %v995, 0.0
    %v1061 = vadd.f32 %v1001, 0.0
    %v1062 = vadd.f32 %v1005, 0.0
    %v1063 = vadd.f32 %v1011, 0.0
    %v1064 = vadd.f32 %v1015, 0.0
    %v1065 = vand.u32 2147483647, %v981
    %v1066 = vand.u32 2147483647, %v985
    %v1067 = vand.u32 2147483647, %v991
    %v1068 = vand.u32 2147483647, %v995
    %v1069 = vand.u32 2147483647, %v1001
    %v1070 = vand.u32 2147483647, %v1005
    %v1071 = vand.u32 2147483647, %v1011
    %v1072 = vand.u32 2147483647, %v1015
    %v1073 = vsub.f32 0.0, %v1065
    %v1074 = vsub.f32 0.0, %v1066
    %v1075 = vsub.f32 0.0, %v1067
    %v1076 = vsub.f32 0.0, %v1068
    %v1077 = vsub.f32 0.0, %v1069
    %v1078 = vsub.f32 0.0, %v1070
    %v1079 = vsub.f32 0.0, %v1071
    %v1080 = vsub.f32 0.0, %v1072
    %v1081 = vmul.f32 %v1073, 1.442695
    %v1082 = vpow.pop %v1081
    %v1083 = vmul.f32 %v1074, 1.442695
    %v1084 = vpow.pop %v1083
    %v1085 = vmul.f32 %v1075, 1.442695
    %v1086 = vpow.pop %v1085
    %v1087 = vmul.f32 %v1076, 1.442695
    %v1088 = vpow.pop %v1087
    %v1089 = vmul.f32 %v1077, 1.442695
    %v1090 = vpow.pop %v1089
    %v1091 = vmul.f32 %v1078, 1.442695
    %v1092 = vpow.pop %v1091
    %v1093 = vmul.f32 %v1079, 1.442695
    %v1094 = vpow.pop %v1093
    %v1095 = vmul.f32 %v1080, 1.442695
    %v1096 = vpow.pop %v1095
    %v1097 = vadd.f32 %v1082, 1.0
    %v1098 = vlog2.pop %v1097
    %v1099 = vmul.f32 %v1098, 0.6931472
    %v1100 = vmul.f32 -0.5, %v1082
    %v1101 = vadd.f32 %v1100, 1.0
    %v1102 = vmul.f32 %v1101, %v1082
    %v1103 = vand.u32 2147483647, %v1082
    %vm1104 = vcmp.lt.f32.partialorder %v1103, 0.0004427343
    %v1105 = vsel %vm1104, %v1102, %v1099
    %v1106 = vadd.f32 %v1084, 1.0
    %v1107 = vlog2.pop %v1106
    %v1108 = vmul.f32 %v1107, 0.6931472
    %v1109 = vmul.f32 -0.5, %v1084
    %v1110 = vadd.f32 %v1109, 1.0
    %v1111 = vmul.f32 %v1110, %v1084
    %v1112 = vand.u32 2147483647, %v1084
    %vm1113 = vcmp.lt.f32.partialorder %v1112, 0.0004427343
    %v1114 = vsel %vm1113, %v1111, %v1108
    %v1115 = vadd.f32 %v1086, 1.0
    %v1116 = vlog2.pop %v1115
    %v1117 = vmul.f32 %v1116, 0.6931472
    %v1118 = vmul.f32 -0.5, %v1086
    %v1119 = vadd.f32 %v1118, 1.0
    %v1120 = vmul.f32 %v1119, %v1086
    %v1121 = vand.u32 2147483647, %v1086
    %vm1122 = vcmp.lt.f32.partialorder %v1121, 0.0004427343
    %v1123 = vsel %vm1122, %v1120, %v1117
    %v1124 = vadd.f32 %v1088, 1.0
    %v1125 = vlog2.pop %v1124
    %v1126 = vmul.f32 %v1125, 0.6931472
    %v1127 = vmul.f32 -0.5, %v1088
    %v1128 = vadd.f32 %v1127, 1.0
    %v1129 = vmul.f32 %v1128, %v1088
    %v1130 = vand.u32 2147483647, %v1088
    %vm1131 = vcmp.lt.f32.partialorder %v1130, 0.0004427343
    %v1132 = vsel %vm1131, %v1129, %v1126
    %v1133 = vadd.f32 %v1090, 1.0
    %v1134 = vlog2.pop %v1133
    %v1135 = vmul.f32 %v1134, 0.6931472
    %v1136 = vmul.f32 -0.5, %v1090
    %v1137 = vadd.f32 %v1136, 1.0
    %v1138 = vmul.f32 %v1137, %v1090
    %v1139 = vand.u32 2147483647, %v1090
    %vm1140 = vcmp.lt.f32.partialorder %v1139, 0.0004427343
    %v1141 = vsel %vm1140, %v1138, %v1135
    %v1142 = vadd.f32 %v1092, 1.0
    %v1143 = vlog2.pop %v1142
    %v1144 = vmul.f32 %v1143, 0.6931472
    %v1145 = vmul.f32 -0.5, %v1092
    %v1146 = vadd.f32 %v1145, 1.0
    %v1147 = vmul.f32 %v1146, %v1092
    %v1148 = vand.u32 2147483647, %v1092
    %vm1149 = vcmp.lt.f32.partialorder %v1148, 0.0004427343
    %v1150 = vsel %vm1149, %v1147, %v1144
    %v1151 = vadd.f32 %v1094, 1.0
    %v1152 = vlog2.pop %v1151
    %v1153 = vmul.f32 %v1152, 0.6931472
    %v1154 = vmul.f32 -0.5, %v1094
    %v1155 = vadd.f32 %v1154, 1.0
    %v1156 = vmul.f32 %v1155, %v1094
    %v1157 = vand.u32 2147483647, %v1094
    %vm1158 = vcmp.lt.f32.partialorder %v1157, 0.0004427343
    %v1159 = vsel %vm1158, %v1156, %v1153
    %v1160 = vadd.f32 %v1096, 1.0
    %v1161 = vlog2.pop %v1160
    %v1162 = vmul.f32 %v1161, 0.6931472
    %v1163 = vmul.f32 -0.5, %v1096
    %v1164 = vadd.f32 %v1163, 1.0
    %v1165 = vmul.f32 %v1164, %v1096
    %v1166 = vand.u32 2147483647, %v1096
    %vm1167 = vcmp.lt.f32.partialorder %v1166, 0.0004427343
    %v1168 = vsel %vm1167, %v1165, %v1162
    %v1169 = vadd.f32 %v1041, %v1105
    %v1170 = vadd.f32 %v1042, %v1114
    %v1171 = vadd.f32 %v1043, %v1123
    %v1172 = vadd.f32 %v1044, %v1132
    %v1173 = vadd.f32 %v1045, %v1141
    %v1174 = vadd.f32 %v1046, %v1150
    %v1175 = vadd.f32 %v1047, %v1159
    %v1176 = vadd.f32 %v1048, %v1168
    %v1177 = vsel %vm1049, %v1057, %v1169
    %v1178 = vsel %vm1050, %v1058, %v1170
    %v1179 = vsel %vm1051, %v1059, %v1171
    %v1180 = vsel %vm1052, %v1060, %v1172
    %v1181 = vsel %vm1053, %v1061, %v1173
    %v1182 = vsel %vm1054, %v1062, %v1174
    %v1183 = vsel %vm1055, %v1063, %v1175
    %v1184 = vsel %vm1056, %v1064, %v1176
    %1185 = vst [vmem:[#allocation7 + $0x8] sm:$0xff] %v1177
    %1186 = vst [vmem:[#allocation7 + $0x18] sm:$0xff] %v1178
    %1187 = vst [vmem:[#allocation7 + $0x28] sm:$0xff] %v1179
    %1188 = vst [vmem:[#allocation7 + $0x38] sm:$0xff] %v1180
    %1189 = vst [vmem:[#allocation7 + $0x48] sm:$0xff] %v1181
    %1190 = vst [vmem:[#allocation7 + $0x58] sm:$0xff] %v1182
    %1191 = vst [vmem:[#allocation7 + $0x68] sm:$0xff] %v1183
    %1192 = vst [vmem:[#allocation7 + $0x78] sm:$0xff] %v1184
    // Predicated region
    $region22: #{tpu_custom_call.1} parent=1 // pred_check
      _
    $region23: #{tpu_custom_call.1} parent=1 // pred_check_branch
      %1194 = sbr.rel (0) target = $region25
    $region24: #{tpu_custom_call.1} parent=1 // pred_region
      %s1196 = ssub.s32 2048, 2048
      %1197 = vsyncadd [#allocation4], %s1196
      %s1198 = sshll.u32 [#allocation7], 4
      %s1199 = int_to_ptr.vmem [resolvable:$true] %s1198
      %1204 = dma.vmem_to_hbm [thread:$0]  %s1199, 2048, %s3, [#allocation4], 256, 256, 16
    $region25: #{tpu_custom_call.1} parent=1 // pred_fallthru
      _
    // Predicated region
    $region26: #{tpu_custom_call.1} parent=1 // pred_check
      _
    $region27: #{tpu_custom_call.1} parent=1 // pred_check_branch
      %1206 = sbr.rel (0) target = $region29
    $region28: #{tpu_custom_call.1} parent=1 // pred_region
      %1207 = dma.done [#allocation4], 2048
    $region29: #{tpu_custom_call.1} parent=1 // pred_fallthru
      _
    %1208 = vsyncpa [#allocation3], 1
    %1209 = vsyncpa [#allocation6], 1
    %1210 = vsyncpa [#allocation4], 1

</llo_original>
